<compile_context>
chip_gen: v7x
topology: tpu7x:2x2x1
jax: 0.10.0
libtpu: 0.0.40
codegen_flags: <defaults>
</compile_context>

<pallas_src>
import jax
import jax.numpy as jnp
from jax.experimental import pallas as pl
from jax.experimental.pallas import tpu as pltpu

HEAD_DIMS = (3, 4, 3, 4)          # fc_0, fc_1, fc_2, fc_3 output sizes
FUSED_OUT = sum(HEAD_DIMS)        # 14
LANE = 128                        # lane-dense output width (zero-padded)
SUBLANE = 8                       # f32 sublane granularity


def _round_up(n, m):
    return ((n + m - 1) // m) * m


def _cdiv(a, b):
    return -(-a // b)


def _num_tensorcores_per_chip():
    """2 on v7x (so we shard the batch grid across both TCs), else 1."""
    try:
        kind = jax.devices()[0].device_kind.lower()
        if "v7" in kind:
            return 2
    except Exception:
        pass
    return 1


def fuse_params(params):
    """Fuse the 4 heads ONCE (hoisted out of the forward path).

    Returns (w_fused [D,128], b_fused [1,128]), zero-padded past lane 14 so
    the kernel's output store is one unmasked lane-dense slab.
    """
    w = jnp.concatenate([params[f"w{i}"] for i in range(4)], axis=1)
    b = jnp.concatenate([params[f"b{i}"] for i in range(4)], axis=1)
    w = jnp.pad(w, ((0, 0), (0, LANE - FUSED_OUT)))
    b = jnp.pad(b, ((0, 0), (0, LANE - FUSED_OUT)))
    return w, b


def _fused_head_kernel(x_ref, w_ref, b_ref, o_ref):
    """One MXU matmul over the fused lane-padded weight + broadcast bias add.

    x_ref: [tm, D], w_ref: [D, 128], b_ref: [1, 128], o_ref: [tm, 128].
    Single unmasked lane-dense store.
    """
    o_ref[...] = (jnp.dot(x_ref[...], w_ref[...],
                          preferred_element_type=jnp.float32)
                  + b_ref[...]).astype(o_ref.dtype)


def _split_heads(flat, B):
    """Slice the fused output back into the 4 heads.

    One contiguous [:B, :14] slice first, then cheap narrow splits of that
    (avoids four strided copies out of the 128-wide slab).
    """
    narrow = flat[:B, :FUSED_OUT]
    outs = []
    off = 0
    for od in HEAD_DIMS:
        outs.append(narrow[:, off:off + od])
        off += od
    return tuple(outs)


def _pallas_forward(x, w_fused, b_fused, tile_m):
    B, D = x.shape
    dtype = x.dtype
    itemsize = jnp.dtype(dtype).itemsize

    # --- Balanced batch tiling: keep padding to < one sublane group per step,
    # and force >= 2 grid steps on v7x so both TensorCores get work.
    n_tiles = max(1, _cdiv(B, tile_m))
    num_tc = _num_tensorcores_per_chip()
    if num_tc > 1 and B >= 2 * SUBLANE:
        n_tiles = max(n_tiles, num_tc)
    tm = _round_up(_cdiv(B, n_tiles), SUBLANE)

    # --- VMEM budget: double-buffered x + out streams capped at ~24 MiB so
    # the kernel fits comfortably on v5e (16 MiB scoped default, raised below)
    # and v7x (64 MiB physical).
    STREAM_BUDGET = 24 << 20
    stream_bytes_per_row = 2 * itemsize * (D + LANE)   # 2x-buffered x row + out row
    max_tm = max(SUBLANE,
                 (STREAM_BUDGET // stream_bytes_per_row) // SUBLANE * SUBLANE)
    tm = min(tm, max_tm)

    Bp = _round_up(B, tm)
    x_p = jnp.pad(x, ((0, Bp - B), (0, 0))) if Bp != B else x
    grid_m = Bp // tm

    # Worst-case (double-buffered) resident weight + streams, with headroom.
    weight_bytes = 2 * D * LANE * itemsize
    vmem_need = weight_bytes + tm * stream_bytes_per_row + (2 << 20)
    vmem_limit = int(min(max(vmem_need, 32 << 20), 48 << 20))
    # TODO(synk): for very large D (>~8K) add a K ("arbitrary") grid axis with
    # an f32 accumulator scratch instead of loading all of D per step.

    cost = pl.CostEstimate(
        flops=2 * Bp * D * LANE,
        transcendentals=0,
        bytes_accessed=(Bp * D + D * LANE + LANE + Bp * LANE) * itemsize,
    )

    def build(single_buffer_resident):
        resident_kwargs = {}
        if single_buffer_resident:
            # Constant index maps -> no benefit from double buffering; halve
            # the resident weight's VMEM footprint.
            resident_kwargs["pipeline_mode"] = pl.Buffered(1)
        return pl.pallas_call(
            _fused_head_kernel,
            out_shape=jax.ShapeDtypeStruct((Bp, LANE), dtype),
            grid_spec=pltpu.PrefetchScalarGridSpec(
                num_scalar_prefetch=0,
                grid=(grid_m,),
                in_specs=[
                    pl.BlockSpec((tm, D), lambda i: (i, 0)),      # x: batch-tiled
                    pl.BlockSpec((D, LANE), lambda i: (0, 0),     # fused W, resident
                                 **resident_kwargs),
                    pl.BlockSpec((1, LANE), lambda i: (0, 0),     # fused b, resident
                                 **resident_kwargs),
                ],
                out_specs=pl.BlockSpec((tm, LANE), lambda i: (i, 0)),
            ),
            compiler_params=pltpu.CompilerParams(
                dimension_semantics=("parallel",),
                vmem_limit_bytes=vmem_limit,
            ),
            cost_estimate=cost,
        )

    try:
        fused = jax.block_until_ready(build(True)(x_p, w_fused, b_fused))
    except Exception:
        # Fallback: default (double-buffered) specs if Buffered(1) is rejected.
        fused = build(False)(x_p, w_fused, b_fused)

    return _split_heads(fused, B)


def multi_classifier_forward(x, w_fused, b_fused, *, tile_m=512, use_pallas=None):
    """Forward pass of MultiClassifier.

    Args:
      x: [B, D] float32 input.
      w_fused, b_fused: pre-fused, lane-padded params from `fuse_params`.
      tile_m: target batch tile size (rows per grid step).
      use_pallas: True/False to force the path; None = auto (tiny batches use
        a plain fused jnp.dot, since the Pallas fixed cost dwarfs the math).

    Returns:
      (x_0, x_1, x_2, x_3) with shapes [B,3], [B,4], [B,3], [B,4].
    """
    B, D = x.shape
    if use_pallas is None:
        use_pallas = (B * D) >= (1 << 16)
    if not use_pallas:
        flat = x @ w_fused[:, :FUSED_OUT] + b_fused[:, :FUSED_OUT]
        return _split_heads(flat, B)
    return _pallas_forward(x, w_fused, b_fused, tile_m)


def init_params(key, input_dim):
    """Deterministic PyTorch-Linear-style init: U(-1/sqrt(D), 1/sqrt(D))."""
    params = {}
    bound = 1.0 / jnp.sqrt(jnp.float32(input_dim))
    keys = jax.random.split(key, 2 * len(HEAD_DIMS))
    for i, od in enumerate(HEAD_DIMS):
        kw, kb = keys[2 * i], keys[2 * i + 1]
        params[f"w{i}"] = jax.random.uniform(
            kw, (input_dim, od), jnp.float32, minval=-bound, maxval=bound)
        params[f"b{i}"] = jax.random.uniform(
            kb, (1, od), jnp.float32, minval=-bound, maxval=bound)
    return params


if __name__ == "__main__":
    key = jax.random.PRNGKey(0)
    k_x, k_x2, k_p = jax.random.split(key, 3)

    D = 32
    params = init_params(k_p, D)
    w_fused, b_fused = fuse_params(params)   # hoisted: fuse + pad once

    def ref_forward(x):
        return tuple(x @ params[f"w{i}"] + params[f"b{i}"] for i in range(4))

    # --- Test 1: small batch, single grid step; force the Pallas path so the
    # kernel itself is exercised (the auto heuristic would take the fast path).
    B1 = 8
    x1 = jax.random.normal(k_x, (B1, D), jnp.float32)
    outs1 = multi_classifier_forward(x1, w_fused, b_fused, use_pallas=True)
    outs1 = jax.block_until_ready(outs1)
    for o, r, od in zip(outs1, ref_forward(x1), HEAD_DIMS):
        assert o.shape == (B1, od), o.shape
        assert jnp.allclose(o, r, atol=1e-5, rtol=1e-5)

    # --- Test 2: ragged batch with a small tile -> multi-step grid, balanced
    # tiling with batch padding that is sliced away.
    B2 = 260
    x2 = jax.random.normal(k_x2, (B2, D), jnp.float32)
    outs2 = multi_classifier_forward(x2, w_fused, b_fused, tile_m=128,
                                     use_pallas=True)
    outs2 = jax.block_until_ready(outs2)
    for o, r, od in zip(outs2, ref_forward(x2), HEAD_DIMS):
        assert o.shape == (B2, od), o.shape
        assert jnp.allclose(o, r, atol=1e-5, rtol=1e-5)

    # --- Test 3: auto path (tiny-batch fast path) matches the reference too.
    outs3 = jax.block_until_ready(multi_classifier_forward(x1, w_fused, b_fused))
    for o, r in zip(outs3, ref_forward(x1)):
        assert jnp.allclose(o, r, atol=1e-5, rtol=1e-5)

    print("KERNEL_OK")
</pallas_src>

<mosaic_0001>
module attributes {stable_mosaic.version = 11 : i64} {
  func.func @_fused_head_kernel(%arg0: i32, %arg1: memref<8x32xf32, #tpu.memory_space<vmem>>, %arg2: memref<32x128xf32, #tpu.memory_space<vmem>>, %arg3: memref<1x128xf32, #tpu.memory_space<vmem>>, %arg4: memref<8x128xf32, #tpu.memory_space<vmem>>) attributes {dimension_semantics = [#tpu.dimension_semantics<parallel>], iteration_bounds = array<i64: 1>, scalar_prefetch = 0 : i64, scratch_operands = 0 : i64, tpu.core_type = #tpu.core_type<tc>, window_params = [{transform_indices = @transform_0, window_bounds = array<i64: 8, 32>}, {pipeline_mode = #tpu.pipeline_mode<synchronous>, transform_indices = @transform_1, window_bounds = array<i64: 32, 128>}, {pipeline_mode = #tpu.pipeline_mode<synchronous>, transform_indices = @transform_2, window_bounds = array<i64: 1, 128>}, {transform_indices = @transform_3, window_bounds = array<i64: 8, 128>}]} {
    %c0 = arith.constant 0 : index
    %c0_0 = arith.constant 0 : index
    %0 = vector.load %arg1[%c0, %c0_0] : memref<8x32xf32, #tpu.memory_space<vmem>>, vector<8x32xf32>
    %c0_1 = arith.constant 0 : index
    %c0_2 = arith.constant 0 : index
    %1 = vector.load %arg2[%c0_1, %c0_2] : memref<32x128xf32, #tpu.memory_space<vmem>>, vector<32x128xf32>
    %cst = arith.constant dense<0.000000e+00> : vector<8x128xf32>
    %2 = tpu.matmul %0, %1, %cst {dimension_numbers = #tpu.dot_dimension_numbers<[1], [0], [0], [1], [0, 0, 1, 1], [], []>} : vector<8x32xf32>, vector<32x128xf32>, vector<8x128xf32> -> vector<8x128xf32>
    %c0_3 = arith.constant 0 : index
    %c0_4 = arith.constant 0 : index
    %3 = vector.load %arg3[%c0_3, %c0_4] : memref<1x128xf32, #tpu.memory_space<vmem>>, vector<1x128xf32>
    %4 = vector.broadcast %3 : vector<1x128xf32> to vector<8x128xf32>
    %5 = arith.addf %2, %4 : vector<8x128xf32>
    %c0_5 = arith.constant 0 : index
    %c0_6 = arith.constant 0 : index
    %6 = vector.load %arg4[%c0_5, %c0_6] : memref<8x128xf32, #tpu.memory_space<vmem>>, vector<8x128xf32>
    tpu.vector_store %arg4[%c0_5, %c0_6], %5 {strides = array<i32>} : memref<8x128xf32, #tpu.memory_space<vmem>>, vector<8x128xf32>,
    return
  }
  func.func @transform_0(%arg0: i32) -> (i32, i32) {
    %c0_i32 = arith.constant 0 : i32
    %c0_i32_0 = arith.constant 0 : i32
    return %arg0, %c0_i32 : i32, i32
  }
  func.func @transform_1(%arg0: i32) -> (i32, i32) {
    %c0_i32 = arith.constant 0 : i32
    %c0_i32_0 = arith.constant 0 : i32
    %c0_i32_1 = arith.constant 0 : i32
    return %c0_i32, %c0_i32_0 : i32, i32
  }
  func.func @transform_2(%arg0: i32) -> (i32, i32) {
    %c0_i32 = arith.constant 0 : i32
    %c0_i32_0 = arith.constant 0 : i32
    %c0_i32_1 = arith.constant 0 : i32
    return %c0_i32, %c0_i32_0 : i32, i32
  }
  func.func @transform_3(%arg0: i32) -> (i32, i32) {
    %c0_i32 = arith.constant 0 : i32
    %c0_i32_0 = arith.constant 0 : i32
    return %arg0, %c0_i32 : i32, i32
  }
}

module attributes {stable_mosaic.version = 11 : i64} {
  func.func @_fused_head_kernel(%arg0: i32, %arg1: memref<8x32xf32, #tpu.memory_space<vmem>>, %arg2: memref<32x128xf32, #tpu.memory_space<vmem>>, %arg3: memref<1x128xf32, #tpu.memory_space<vmem>>, %arg4: memref<8x128xf32, #tpu.memory_space<vmem>>) attributes {dimension_semantics = [#tpu.dimension_semantics<parallel>], iteration_bounds = array<i64: 1>, scalar_prefetch = 0 : i64, scratch_operands = 0 : i64, tpu.core_type = #tpu.core_type<tc>, window_params = [{transform_indices = @transform_0, window_bounds = array<i64: 8, 32>}, {pipeline_mode = #tpu.pipeline_mode<synchronous>, transform_indices = @transform_1, window_bounds = array<i64: 32, 128>}, {pipeline_mode = #tpu.pipeline_mode<synchronous>, transform_indices = @transform_2, window_bounds = array<i64: 1, 128>}, {transform_indices = @transform_3, window_bounds = array<i64: 8, 128>}]} {
    %c0 = arith.constant 0 : index
    %c0_0 = arith.constant 0 : index
    %0 = vector.load %arg1[%c0, %c0_0] : memref<8x32xf32, #tpu.memory_space<vmem>>, vector<8x32xf32>
    %c0_1 = arith.constant 0 : index
    %c0_2 = arith.constant 0 : index
    %1 = vector.load %arg2[%c0_1, %c0_2] : memref<32x128xf32, #tpu.memory_space<vmem>>, vector<32x128xf32>
    %cst = arith.constant dense<0.000000e+00> : vector<8x128xf32>
    %2 = tpu.matmul %0, %1, %cst {dimension_numbers = #tpu.dot_dimension_numbers<[1], [0], [0], [1], [0, 0, 1, 1], [], []>} : vector<8x32xf32>, vector<32x128xf32>, vector<8x128xf32> -> vector<8x128xf32>
    %c0_3 = arith.constant 0 : index
    %c0_4 = arith.constant 0 : index
    %3 = vector.load %arg3[%c0_3, %c0_4] : memref<1x128xf32, #tpu.memory_space<vmem>>, vector<1x128xf32>
    %4 = vector.broadcast %3 : vector<1x128xf32> to vector<8x128xf32>
    %5 = arith.addf %2, %4 : vector<8x128xf32>
    %c0_5 = arith.constant 0 : index
    %c0_6 = arith.constant 0 : index
    %6 = vector.load %arg4[%c0_5, %c0_6] : memref<8x128xf32, #tpu.memory_space<vmem>>, vector<8x128xf32>
    tpu.vector_store %arg4[%c0_5, %c0_6], %5 {strides = array<i32>} : memref<8x128xf32, #tpu.memory_space<vmem>>, vector<8x128xf32>,
    return
  }
  func.func @transform_0(%arg0: i32) -> (i32, i32) {
    %c0_i32 = arith.constant 0 : i32
    %c0_i32_0 = arith.constant 0 : i32
    return %arg0, %c0_i32 : i32, i32
  }
  func.func @transform_1(%arg0: i32) -> (i32, i32) {
    %c0_i32 = arith.constant 0 : i32
    %c0_i32_0 = arith.constant 0 : i32
    %c0_i32_1 = arith.constant 0 : i32
    return %c0_i32, %c0_i32_0 : i32, i32
  }
  func.func @transform_2(%arg0: i32) -> (i32, i32) {
    %c0_i32 = arith.constant 0 : i32
    %c0_i32_0 = arith.constant 0 : i32
    %c0_i32_1 = arith.constant 0 : i32
    return %c0_i32, %c0_i32_0 : i32, i32
  }
  func.func @transform_3(%arg0: i32) -> (i32, i32) {
    %c0_i32 = arith.constant 0 : i32
    %c0_i32_0 = arith.constant 0 : i32
    return %arg0, %c0_i32 : i32, i32
  }
}

</mosaic_0001>

<llo_original>
// kernel: tpu_custom_call.1
$region0: #{tpu_custom_call.1}
  #allocation0 [shape = 'u32[]', space=smem, size = 0x4, offset = 0x4, fixed_abs, tag = 'smem constant byte address 0x4 - core index']
  #allocation1 [shape = 'u32[144,128]{1,0:T(1,128)}', space=vmem, size = 0x12000, scoped, tag = 'internal scratch']
  %s0 = inlined_call_operand.hbm [shape: f32[8,32], index: 0, kind: input, shape index: {}]
  %s1 = inlined_call_operand.hbm [shape: f32[32,128], index: 1, kind: input, shape index: {}]
  %s2 = inlined_call_operand.vmem [shape: f32[1,128], index: 2, kind: input, shape index: {}]
  %s3 = inlined_call_operand.hbm [shape: f32[8,128], index: 3, kind: output, shape index: {}]
  %s4 = sld [smem:[#allocation0]]
  $region30: #{tpu_custom_call.1} parent=0
    _
  %s6 = ssub.s32 1, %s4
  %s7 = scalar_select 0, %s6, %s4
  $region1: #{tpu_custom_call.1} parent=0
    #allocation2 [shape = 'u8[4096]{0}', space=vmem, size = 0x1000, scoped, tag = 'input window, operand 0, single buffered']
    #allocation3 [shape = 's32[1]{0}', space=sflag, size = 0x4, scoped, tag = 'scoped memory for tpu_custom_call.1']
    #allocation4 [shape = 's32[1]{0}', space=sflag, size = 0x4, scoped, tag = 'scoped memory for tpu_custom_call.1']
    #allocation5 [shape = 'u8[16384]{0}', space=vmem, size = 0x4000, scoped, tag = 'input window, operand 1, single buffered']
    #allocation6 [shape = 's32[1]{0}', space=sflag, size = 0x4, scoped, tag = 'scoped memory for tpu_custom_call.1']
    #allocation7 [shape = 'u8[4096]{0}', space=vmem, size = 0x1000, scoped, tag = 'output window, operand 0, single buffered']
    %8 = vsyncpa [#allocation3], 0
    %9 = vsyncpa [#allocation6], 0
    %10 = vsyncpa [#allocation4], 0
    // Predicated region
    $region2: #{tpu_custom_call.1} parent=1 // pred_check
      _
    $region3: #{tpu_custom_call.1} parent=1 // pred_check_branch
      %12 = sbr.rel (0) target = $region5
    $region4: #{tpu_custom_call.1} parent=1 // pred_region
      %s14 = ssub.s32 128, 128
      %15 = vsyncadd [#allocation3], %s14
      %s17 = sshll.u32 [#allocation2], 4
      %s18 = int_to_ptr.vmem [resolvable:$true] %s17
      %20 = dma.hbm_to_vmem [thread:$0]  %s0, 128, %s18, [#allocation3]
    $region5: #{tpu_custom_call.1} parent=1 // pred_fallthru
      _
    // Predicated region
    $region6: #{tpu_custom_call.1} parent=1 // pred_check
      _
    $region7: #{tpu_custom_call.1} parent=1 // pred_check_branch
      %22 = sbr.rel (0) target = $region9
    $region8: #{tpu_custom_call.1} parent=1 // pred_region
      %s24 = ssub.s32 512, 512
      %25 = vsyncadd [#allocation6], %s24
      %s26 = sshll.u32 [#allocation5], 4
      %s27 = int_to_ptr.vmem [resolvable:$true] %s26
      %32 = dma.hbm_to_vmem [thread:$0]  %s1, 512, %s27, [#allocation6], 128, 128, 8
    $region9: #{tpu_custom_call.1} parent=1 // pred_fallthru
      _
    // Predicated region
    $region10: #{tpu_custom_call.1} parent=1 // pred_check
      _
    $region11: #{tpu_custom_call.1} parent=1 // pred_check_branch
      %34 = sbr.rel (0) target = $region13
    $region12: #{tpu_custom_call.1} parent=1 // pred_region
      _
    $region13: #{tpu_custom_call.1} parent=1 // pred_fallthru
      _
    // Predicated region
    $region14: #{tpu_custom_call.1} parent=1 // pred_check
      _
    $region15: #{tpu_custom_call.1} parent=1 // pred_check_branch
      %36 = sbr.rel (0) target = $region17
    $region16: #{tpu_custom_call.1} parent=1 // pred_region
      %37 = dma.done [#allocation3], 128
    $region17: #{tpu_custom_call.1} parent=1 // pred_fallthru
      _
    // Predicated region
    $region18: #{tpu_custom_call.1} parent=1 // pred_check
      _
    $region19: #{tpu_custom_call.1} parent=1 // pred_check_branch
      %39 = sbr.rel (0) target = $region21
    $region20: #{tpu_custom_call.1} parent=1 // pred_region
      %40 = dma.done [#allocation6], 512
    $region21: #{tpu_custom_call.1} parent=1 // pred_fallthru
      _
    %v41 = vld [vmem:[#allocation2] sm:$0xff]
    %v42 = vld [vmem:[#allocation5] sm:$0xff]
    %v43 = vld [vmem:[#allocation5 + $0x8] sm:$0xff]
    %v44 = vld [vmem:[#allocation5 + $0x10] sm:$0xff]
    %v45 = vld [vmem:[#allocation5 + $0x18] sm:$0xff]
    %v46 = vld [vmem:[%s2] sm:$0x1]
    %v48 = vlaneseq
    %v49 = vshrl.u32 %v48, 7
    %v50 = vsub.s32 0, %v49
    %v51 = vrot.slane %v46, %v50
    %vm53 = vcmask 261120
    %v55 = vsel %vm53, %v41, 0
    %57 = vmatprep.subr.mxu0 0.0
    %58 = vmatpush1.msra.mxu0 %v42
    %59 = vmatprep.subr.mxu0 0.0
    %60 = vmatpush1.msra.mxu0 %v43
    %61 = vmatprep.subr.mxu0 0.0
    %62 = vmatpush1.msra.mxu0 %v44
    %63 = vmatprep.subr.mxu0 0.0
    %64 = vmatpush1.msra.mxu0 %v45
    %65 = vmatprep.subr.mxu0 0.0
    %66 = vmatpush1.msra.mxu0 0.0
    %67 = vmatprep.subr.mxu0 0.0
    %68 = vmatpush1.msra.mxu0 0.0
    %69 = vmatprep.subr.mxu0 0.0
    %70 = vmatpush1.msra.mxu0 0.0
    %71 = vmatprep.subr.mxu0 0.0
    %72 = vmatpush1.msra.mxu0 0.0
    %73 = vmatprep.subr.mxu0 0.0
    %74 = vmatpush1.msra.mxu0 0.0
    %75 = vmatprep.subr.mxu0 0.0
    %76 = vmatpush1.msra.mxu0 0.0
    %77 = vmatprep.subr.mxu0 0.0
    %78 = vmatpush1.msra.mxu0 0.0
    %79 = vmatprep.subr.mxu0 0.0
    %80 = vmatpush1.msra.mxu0 0.0
    %81 = vmatprep.subr.mxu0 0.0
    %82 = vmatpush1.msra.mxu0 0.0
    %83 = vmatprep.subr.mxu0 0.0
    %84 = vmatpush1.msra.mxu0 0.0
    %85 = vmatprep.subr.mxu0 0.0
    %86 = vmatpush1.msra.mxu0 0.0
    %87 = vmatprep.subr.mxu0 0.0
    %88 = vmatpush1.msra.mxu0 0.0
    %89 = vmatprep.subr.mxu0 0.0
    %90 = vmatpush1.msra.mxu0 0.0
    %91 = vmatprep.subr.mxu0 0.0
    %92 = vmatpush1.msra.mxu0 0.0
    %93 = vmatprep.subr.mxu0 0.0
    %94 = vmatpush1.msra.mxu0 0.0
    %95 = vmatprep.subr.mxu0 0.0
    %96 = vmatpush1.msra.mxu0 0.0
    %97 = vmatprep.subr.mxu0 0.0
    %98 = vmatpush1.msra.mxu0 0.0
    %99 = vmatprep.subr.mxu0 0.0
    %100 = vmatpush1.msra.mxu0 0.0
    %101 = vmatprep.subr.mxu0 0.0
    %102 = vmatpush1.msra.mxu0 0.0
    %103 = vmatprep.subr.mxu0 0.0
    %104 = vmatpush1.msra.mxu0 0.0
    %105 = vmatprep.subr.mxu0 0.0
    %106 = vmatpush1.msra.mxu0 0.0
    %107 = vmatprep.subr.mxu0 0.0
    %108 = vmatpush1.msra.mxu0 0.0
    %109 = vmatprep.subr.mxu0 0.0
    %110 = vmatpush1.msra.mxu0 0.0
    %111 = vmatprep.subr.mxu0 0.0
    %112 = vmatpush1.msra.mxu0 0.0
    %113 = vmatprep.subr.mxu0 0.0
    %114 = vmatpush1.msra.mxu0 0.0
    %115 = vmatprep.subr.mxu0 0.0
    %116 = vmatpush1.msra.mxu0 0.0
    %117 = vmatprep.subr.mxu0 0.0
    %118 = vmatpush1.msra.mxu0 0.0
    %119 = vmatprep.subr.mxu0 0.0
    %120 = vmatpush1.msra.mxu0 0.0
    %121 = vmatprep.mubr.f32.mxu0 0.0
    %122 = vmatmul.mubr.f32.gmra.mrb[0].mxu0 %v55
    %v123 = vpop.f32.mrb[0].mxu0
    %v124 = vadd.f32 %v51, %v123
    %v125 = vpop.f32.mrb[0].mxu0
    %126 = vdwg.mxu0
    %127 = vst [vmem:[#allocation7] sm:$0xff] %v124
    // Predicated region
    $region22: #{tpu_custom_call.1} parent=1 // pred_check
      _
    $region23: #{tpu_custom_call.1} parent=1 // pred_check_branch
      %129 = sbr.rel (0) target = $region25
    $region24: #{tpu_custom_call.1} parent=1 // pred_region
      %s131 = ssub.s32 128, 128
      %132 = vsyncadd [#allocation4], %s131
      %s134 = sshll.u32 [#allocation7], 4
      %s135 = int_to_ptr.vmem [resolvable:$true] %s134
      %137 = dma.vmem_to_hbm [thread:$0]  %s135, 128, %s3, [#allocation4]
    $region25: #{tpu_custom_call.1} parent=1 // pred_fallthru
      _
    // Predicated region
    $region26: #{tpu_custom_call.1} parent=1 // pred_check
      _
    $region27: #{tpu_custom_call.1} parent=1 // pred_check_branch
      %139 = sbr.rel (0) target = $region29
    $region28: #{tpu_custom_call.1} parent=1 // pred_region
      %140 = dma.done [#allocation4], 128
    $region29: #{tpu_custom_call.1} parent=1 // pred_fallthru
      _
    %141 = vsyncpa [#allocation3], 1
    %142 = vsyncpa [#allocation6], 1
    %143 = vsyncpa [#allocation4], 1

// kernel: tpu_custom_call.1
$region0: #{tpu_custom_call.1}
  #allocation0 [shape = 'u32[]', space=smem, size = 0x4, offset = 0x4, fixed_abs, tag = 'smem constant byte address 0x4 - core index']
  #allocation1 [shape = 'u32[144,128]{1,0:T(1,128)}', space=vmem, size = 0x12000, scoped, tag = 'internal scratch']
  %s0 = inlined_call_operand.hbm [shape: f32[8,32], index: 0, kind: input, shape index: {}]
  %s1 = inlined_call_operand.hbm [shape: f32[32,128], index: 1, kind: input, shape index: {}]
  %s2 = inlined_call_operand.vmem [shape: f32[1,128], index: 2, kind: input, shape index: {}]
  %s3 = inlined_call_operand.hbm [shape: f32[8,128], index: 3, kind: output, shape index: {}]
  %s4 = sld [smem:[#allocation0]]
  $region30: #{tpu_custom_call.1} parent=0
    _
  %s6 = ssub.s32 1, %s4
  %s7 = scalar_select 0, %s6, %s4
  $region1: #{tpu_custom_call.1} parent=0
    #allocation2 [shape = 'u8[4096]{0}', space=vmem, size = 0x1000, scoped, tag = 'input window, operand 0, single buffered']
    #allocation3 [shape = 's32[1]{0}', space=sflag, size = 0x4, scoped, tag = 'scoped memory for tpu_custom_call.1']
    #allocation4 [shape = 's32[1]{0}', space=sflag, size = 0x4, scoped, tag = 'scoped memory for tpu_custom_call.1']
    #allocation5 [shape = 'u8[16384]{0}', space=vmem, size = 0x4000, scoped, tag = 'input window, operand 1, single buffered']
    #allocation6 [shape = 's32[1]{0}', space=sflag, size = 0x4, scoped, tag = 'scoped memory for tpu_custom_call.1']
    #allocation7 [shape = 'u8[4096]{0}', space=vmem, size = 0x1000, scoped, tag = 'output window, operand 0, single buffered']
    %8 = vsyncpa [#allocation3], 0
    %9 = vsyncpa [#allocation6], 0
    %10 = vsyncpa [#allocation4], 0
    // Predicated region
    $region2: #{tpu_custom_call.1} parent=1 // pred_check
      _
    $region3: #{tpu_custom_call.1} parent=1 // pred_check_branch
      %12 = sbr.rel (0) target = $region5
    $region4: #{tpu_custom_call.1} parent=1 // pred_region
      %s14 = ssub.s32 128, 128
      %15 = vsyncadd [#allocation3], %s14
      %s17 = sshll.u32 [#allocation2], 4
      %s18 = int_to_ptr.vmem [resolvable:$true] %s17
      %20 = dma.hbm_to_vmem [thread:$0]  %s0, 128, %s18, [#allocation3]
    $region5: #{tpu_custom_call.1} parent=1 // pred_fallthru
      _
    // Predicated region
    $region6: #{tpu_custom_call.1} parent=1 // pred_check
      _
    $region7: #{tpu_custom_call.1} parent=1 // pred_check_branch
      %22 = sbr.rel (0) target = $region9
    $region8: #{tpu_custom_call.1} parent=1 // pred_region
      %s24 = ssub.s32 512, 512
      %25 = vsyncadd [#allocation6], %s24
      %s26 = sshll.u32 [#allocation5], 4
      %s27 = int_to_ptr.vmem [resolvable:$true] %s26
      %32 = dma.hbm_to_vmem [thread:$0]  %s1, 512, %s27, [#allocation6], 128, 128, 8
    $region9: #{tpu_custom_call.1} parent=1 // pred_fallthru
      _
    // Predicated region
    $region10: #{tpu_custom_call.1} parent=1 // pred_check
      _
    $region11: #{tpu_custom_call.1} parent=1 // pred_check_branch
      %34 = sbr.rel (0) target = $region13
    $region12: #{tpu_custom_call.1} parent=1 // pred_region
      _
    $region13: #{tpu_custom_call.1} parent=1 // pred_fallthru
      _
    // Predicated region
    $region14: #{tpu_custom_call.1} parent=1 // pred_check
      _
    $region15: #{tpu_custom_call.1} parent=1 // pred_check_branch
      %36 = sbr.rel (0) target = $region17
    $region16: #{tpu_custom_call.1} parent=1 // pred_region
      %37 = dma.done [#allocation3], 128
    $region17: #{tpu_custom_call.1} parent=1 // pred_fallthru
      _
    // Predicated region
    $region18: #{tpu_custom_call.1} parent=1 // pred_check
      _
    $region19: #{tpu_custom_call.1} parent=1 // pred_check_branch
      %39 = sbr.rel (0) target = $region21
    $region20: #{tpu_custom_call.1} parent=1 // pred_region
      %40 = dma.done [#allocation6], 512
    $region21: #{tpu_custom_call.1} parent=1 // pred_fallthru
      _
    %v41 = vld [vmem:[#allocation2] sm:$0xff]
    %v42 = vld [vmem:[#allocation5] sm:$0xff]
    %v43 = vld [vmem:[#allocation5 + $0x8] sm:$0xff]
    %v44 = vld [vmem:[#allocation5 + $0x10] sm:$0xff]
    %v45 = vld [vmem:[#allocation5 + $0x18] sm:$0xff]
    %v46 = vld [vmem:[%s2] sm:$0x1]
    %v48 = vlaneseq
    %v49 = vshrl.u32 %v48, 7
    %v50 = vsub.s32 0, %v49
    %v51 = vrot.slane %v46, %v50
    %vm53 = vcmask 261120
    %v55 = vsel %vm53, %v41, 0
    %57 = vmatprep.subr.mxu0 0.0
    %58 = vmatpush1.msra.mxu0 %v42
    %59 = vmatprep.subr.mxu0 0.0
    %60 = vmatpush1.msra.mxu0 %v43
    %61 = vmatprep.subr.mxu0 0.0
    %62 = vmatpush1.msra.mxu0 %v44
    %63 = vmatprep.subr.mxu0 0.0
    %64 = vmatpush1.msra.mxu0 %v45
    %65 = vmatprep.subr.mxu0 0.0
    %66 = vmatpush1.msra.mxu0 0.0
    %67 = vmatprep.subr.mxu0 0.0
    %68 = vmatpush1.msra.mxu0 0.0
    %69 = vmatprep.subr.mxu0 0.0
    %70 = vmatpush1.msra.mxu0 0.0
    %71 = vmatprep.subr.mxu0 0.0
    %72 = vmatpush1.msra.mxu0 0.0
    %73 = vmatprep.subr.mxu0 0.0
    %74 = vmatpush1.msra.mxu0 0.0
    %75 = vmatprep.subr.mxu0 0.0
    %76 = vmatpush1.msra.mxu0 0.0
    %77 = vmatprep.subr.mxu0 0.0
    %78 = vmatpush1.msra.mxu0 0.0
    %79 = vmatprep.subr.mxu0 0.0
    %80 = vmatpush1.msra.mxu0 0.0
    %81 = vmatprep.subr.mxu0 0.0
    %82 = vmatpush1.msra.mxu0 0.0
    %83 = vmatprep.subr.mxu0 0.0
    %84 = vmatpush1.msra.mxu0 0.0
    %85 = vmatprep.subr.mxu0 0.0
    %86 = vmatpush1.msra.mxu0 0.0
    %87 = vmatprep.subr.mxu0 0.0
    %88 = vmatpush1.msra.mxu0 0.0
    %89 = vmatprep.subr.mxu0 0.0
    %90 = vmatpush1.msra.mxu0 0.0
    %91 = vmatprep.subr.mxu0 0.0
    %92 = vmatpush1.msra.mxu0 0.0
    %93 = vmatprep.subr.mxu0 0.0
    %94 = vmatpush1.msra.mxu0 0.0
    %95 = vmatprep.subr.mxu0 0.0
    %96 = vmatpush1.msra.mxu0 0.0
    %97 = vmatprep.subr.mxu0 0.0
    %98 = vmatpush1.msra.mxu0 0.0
    %99 = vmatprep.subr.mxu0 0.0
    %100 = vmatpush1.msra.mxu0 0.0
    %101 = vmatprep.subr.mxu0 0.0
    %102 = vmatpush1.msra.mxu0 0.0
    %103 = vmatprep.subr.mxu0 0.0
    %104 = vmatpush1.msra.mxu0 0.0
    %105 = vmatprep.subr.mxu0 0.0
    %106 = vmatpush1.msra.mxu0 0.0
    %107 = vmatprep.subr.mxu0 0.0
    %108 = vmatpush1.msra.mxu0 0.0
    %109 = vmatprep.subr.mxu0 0.0
    %110 = vmatpush1.msra.mxu0 0.0
    %111 = vmatprep.subr.mxu0 0.0
    %112 = vmatpush1.msra.mxu0 0.0
    %113 = vmatprep.subr.mxu0 0.0
    %114 = vmatpush1.msra.mxu0 0.0
    %115 = vmatprep.subr.mxu0 0.0
    %116 = vmatpush1.msra.mxu0 0.0
    %117 = vmatprep.subr.mxu0 0.0
    %118 = vmatpush1.msra.mxu0 0.0
    %119 = vmatprep.subr.mxu0 0.0
    %120 = vmatpush1.msra.mxu0 0.0
    %121 = vmatprep.mubr.f32.mxu0 0.0
    %122 = vmatmul.mubr.f32.gmra.mrb[0].mxu0 %v55
    %v123 = vpop.f32.mrb[0].mxu0
    %v124 = vadd.f32 %v51, %v123
    %v125 = vpop.f32.mrb[0].mxu0
    %126 = vdwg.mxu0
    %127 = vst [vmem:[#allocation7] sm:$0xff] %v124
    // Predicated region
    $region22: #{tpu_custom_call.1} parent=1 // pred_check
      _
    $region23: #{tpu_custom_call.1} parent=1 // pred_check_branch
      %129 = sbr.rel (0) target = $region25
    $region24: #{tpu_custom_call.1} parent=1 // pred_region
      %s131 = ssub.s32 128, 128
      %132 = vsyncadd [#allocation4], %s131
      %s134 = sshll.u32 [#allocation7], 4
      %s135 = int_to_ptr.vmem [resolvable:$true] %s134
      %137 = dma.vmem_to_hbm [thread:$0]  %s135, 128, %s3, [#allocation4]
    $region25: #{tpu_custom_call.1} parent=1 // pred_fallthru
      _
    // Predicated region
    $region26: #{tpu_custom_call.1} parent=1 // pred_check
      _
    $region27: #{tpu_custom_call.1} parent=1 // pred_check_branch
      %139 = sbr.rel (0) target = $region29
    $region28: #{tpu_custom_call.1} parent=1 // pred_region
      %140 = dma.done [#allocation4], 128
    $region29: #{tpu_custom_call.1} parent=1 // pred_fallthru
      _
    %141 = vsyncpa [#allocation3], 1
    %142 = vsyncpa [#allocation6], 1
    %143 = vsyncpa [#allocation4], 1

</llo_original>
